<compile_context>
chip_gen: v6e
topology: v6e:2x2x1
jax: 0.10.0
libtpu: 0.0.40
codegen_flags: <defaults>
</compile_context>

<pallas_src>
import jax
import jax.numpy as jnp
from jax.experimental import pallas as pl
from jax.experimental.pallas import tpu as pltpu


_LANE_WIDTH = 1024                    # 8 sublanes * 128 lanes -> one full f32 vreg per row
_TARGET_TILE_BYTES = 4 * 1024 * 1024  # ~4 MiB per buffer; 2 in + 2 out bufs ~= 16 MiB
_VMEM_LIMIT_BYTES = 32 * 1024 * 1024  # explicit scoped-VMEM; safe on v5e/v6e/v7x
_MIN_GRID_STEPS = 4                   # keep pipelining / megacore sharding alive


def _hsigmoid_math(x):
    # relu6(x + 3) / 6 == clip(x + 3, 0, 6) * (1/6).  Multiply (not divide) so
    # nothing is forced through the EUP divide/reciprocal path; weak-typed
    # Python constants keep bf16 inputs in bf16.
    return jnp.clip(x + 3.0, 0.0, 6.0) * (1.0 / 6.0)


def _hsigmoid_kernel(x_ref, o_ref):
    o_ref[...] = _hsigmoid_math(x_ref[...]).astype(o_ref.dtype)


def _round_up(a: int, b: int) -> int:
    return ((a + b - 1) // b) * b


def _sublane_align(dtype) -> int:
    # Native TPU tile heights: f32 -> 8, 16-bit -> 16, 8-bit -> 32 rows.
    itemsize = jnp.dtype(dtype).itemsize
    return max(8, 32 // max(itemsize, 1))


def _run_bulk(x2d: jax.Array, tr: int) -> jax.Array:
    """Run the elementwise kernel over a lane-dense (R, 1024) view."""
    R, C = x2d.shape
    grid = (pl.cdiv(R, tr),)
    return pl.pallas_call(
        _hsigmoid_kernel,
        out_shape=jax.ShapeDtypeStruct((R, C), x2d.dtype),
        grid_spec=pltpu.PrefetchScalarGridSpec(
            num_scalar_prefetch=0,
            grid=grid,
            in_specs=[pl.BlockSpec((tr, C), lambda i: (i, 0))],
            out_specs=pl.BlockSpec((tr, C), lambda i: (i, 0)),
        ),
        compiler_params=pltpu.CompilerParams(
            dimension_semantics=("parallel",),
            vmem_limit_bytes=_VMEM_LIMIT_BYTES,
        ),
    )(x2d)


def hsigmoid(x: jax.Array) -> jax.Array:
    """Elementwise hard-sigmoid: relu6(x + 3) / 6, matching the PyTorch module."""
    orig_shape = x.shape
    dtype = x.dtype
    n = x.size
    if n == 0:
        return x

    C = _LANE_WIDTH
    r = n // C              # full lane-dense rows handled by the Pallas kernel
    tail = n - r * C        # < 1024 leftover elements handled by plain jnp

    # Fast path: not even one lane-dense row -> fused XLA elementwise op wins
    # over kernel launch + layout plumbing.
    if r == 0:
        return _hsigmoid_math(x).astype(dtype)

    flat = x.reshape(-1)
    bulk2d = flat[: r * C].reshape(r, C)   # free view when tail == 0

    itemsize = jnp.dtype(dtype).itemsize
    align = _sublane_align(dtype)

    # Rows per grid step: target ~_TARGET_TILE_BYTES per buffer, but keep at
    # least ~_MIN_GRID_STEPS grid steps (when the data is big enough) so DMA
    # double buffering and v7x 2-TC sharding stay engaged.  Always a multiple
    # of the native sublane tile height for this dtype.
    tr_target = max(align, (_TARGET_TILE_BYTES // (C * itemsize)) // align * align)
    tr_for_steps = _round_up(pl.cdiv(r, _MIN_GRID_STEPS), align)
    tr = max(align, min(tr_target, tr_for_steps))
    if tr >= r:
        # Single block covering the whole (r, C) array; legal for any r.
        tr = r

    out_bulk = _run_bulk(bulk2d, tr).reshape(-1)

    if tail == 0:
        return out_bulk.reshape(orig_shape)

    # Remainder path (< 1024 elements): plain jnp on the tail, then stitch.
    # Costs one copy of the bulk output (concatenate) but avoids the old
    # pad+slice round trip on BOTH the input and output sides.
    out_tail = _hsigmoid_math(flat[r * C:]).astype(dtype)
    return jnp.concatenate([out_bulk, out_tail]).reshape(orig_shape)


def _reference(x):
    return jnp.clip(x + 3.0, 0.0, 6.0) / 6.0


if __name__ == "__main__":
    key = jax.random.PRNGKey(0)

    # Primary test: small NCHW input (2048 elements = 2 lane-dense rows);
    # runs the Pallas kernel with a single full-array block.
    x = jax.random.normal(key, (2, 4, 16, 16), dtype=jnp.float32) * 4.0
    out = hsigmoid(x)
    jax.block_until_ready(out)
    assert out.shape == x.shape and out.dtype == x.dtype
    assert jnp.allclose(out, _reference(x), atol=1e-6), "mismatch (small input)"

    # Multi-tile grid path (grid > 1, whole rows, no tail).
    k1, k2 = jax.random.split(jax.random.PRNGKey(1))
    x_big = jax.random.normal(k1, (4, 256, 32, 32), dtype=jnp.float32) * 4.0
    out_big = hsigmoid(x_big)
    jax.block_until_ready(out_big)
    assert jnp.allclose(out_big, _reference(x_big), atol=1e-6), "mismatch (big input)"

    # Ragged path: partial last block in the kernel + <1024-element jnp tail.
    x_rag = jax.random.normal(k2, (1, 3, 41, 85), dtype=jnp.float32) * 4.0
    out_rag = hsigmoid(x_rag)
    jax.block_until_ready(out_rag)
    assert out_rag.shape == x_rag.shape and out_rag.dtype == x_rag.dtype
    assert jnp.allclose(out_rag, _reference(x_rag), atol=1e-6), "mismatch (ragged input)"

    print("KERNEL_OK")
</pallas_src>

<mosaic_0001>
module attributes {stable_mosaic.version = 11 : i64} {
  func.func @_hsigmoid_kernel(%arg0: i32, %arg1: memref<2x1024xf32, #tpu.memory_space<vmem>>, %arg2: memref<2x1024xf32, #tpu.memory_space<vmem>>) attributes {dimension_semantics = [#tpu.dimension_semantics<parallel>], iteration_bounds = array<i64: 1>, scalar_prefetch = 0 : i64, scratch_operands = 0 : i64, tpu.core_type = #tpu.core_type<tc>, window_params = [{transform_indices = @transform_0, window_bounds = array<i64: 2, 1024>}, {transform_indices = @transform_1, window_bounds = array<i64: 2, 1024>}]} {
    %c0 = arith.constant 0 : index
    %c0_0 = arith.constant 0 : index
    %0 = vector.load %arg1[%c0, %c0_0] : memref<2x1024xf32, #tpu.memory_space<vmem>>, vector<2x1024xf32>
    %cst = arith.constant 3.000000e+00 : f32
    %1 = vector.broadcast %cst : f32 to vector<2x1024xf32>
    %2 = arith.addf %0, %1 : vector<2x1024xf32>
    %cst_1 = arith.constant 0.000000e+00 : f32
    %cst_2 = arith.constant 6.000000e+00 : f32
    %3 = vector.broadcast %cst_1 : f32 to vector<2x1024xf32>
    %4 = arith.maximumf %3, %2 : vector<2x1024xf32>
    %5 = vector.broadcast %cst_2 : f32 to vector<2x1024xf32>
    %6 = arith.minimumf %5, %4 : vector<2x1024xf32>
    %cst_3 = arith.constant 0.166666672 : f32
    %7 = vector.broadcast %cst_3 : f32 to vector<2x1024xf32>
    %8 = arith.mulf %6, %7 : vector<2x1024xf32>
    %c0_4 = arith.constant 0 : index
    %c0_5 = arith.constant 0 : index
    %9 = vector.load %arg2[%c0_4, %c0_5] : memref<2x1024xf32, #tpu.memory_space<vmem>>, vector<2x1024xf32>
    tpu.vector_store %arg2[%c0_4, %c0_5], %8 {strides = array<i32>} : memref<2x1024xf32, #tpu.memory_space<vmem>>, vector<2x1024xf32>,
    return
  }
  func.func @transform_0(%arg0: i32) -> (i32, i32) {
    %c0_i32 = arith.constant 0 : i32
    %c0_i32_0 = arith.constant 0 : i32
    return %arg0, %c0_i32 : i32, i32
  }
  func.func @transform_1(%arg0: i32) -> (i32, i32) {
    %c0_i32 = arith.constant 0 : i32
    %c0_i32_0 = arith.constant 0 : i32
    return %arg0, %c0_i32 : i32, i32
  }
}

</mosaic_0001>

<llo_original>
// kernel: tpu_custom_call.1
$region0: #{tpu_custom_call.1}
  #allocation0 [shape = 'u32[]', space=smem, size = 0x4, offset = 0x4, fixed_abs, tag = 'smem constant byte address 0x4 - core index']
  #allocation1 [shape = 'u32[144,128]{1,0:T(1,128)}', space=vmem, size = 0x12000, scoped, tag = 'internal scratch']
  %s0 = inlined_call_operand.hbm [shape: f32[2,1024], index: 0, kind: input, shape index: {}]
  %s1 = inlined_call_operand.hbm [shape: f32[2,1024], index: 1, kind: output, shape index: {}]
  %s2 = sld [smem:[#allocation0]]
  $region18: #{tpu_custom_call.1} parent=0
    _
  %s4 = ssub.s32 1, %s2
  %s5 = scalar_select 0, %s4, %s2
  $region1: #{tpu_custom_call.1} parent=0
    #allocation2 [shape = 'u8[8192]{0}', space=vmem, size = 0x2000, scoped, tag = 'input window, operand 0, single buffered']
    #allocation3 [shape = 's32[1]{0}', space=sflag, size = 0x4, scoped, tag = 'scoped memory for tpu_custom_call.1']
    #allocation4 [shape = 's32[1]{0}', space=sflag, size = 0x4, scoped, tag = 'scoped memory for tpu_custom_call.1']
    #allocation5 [shape = 'u8[8192]{0}', space=vmem, size = 0x2000, scoped, tag = 'output window, operand 0, single buffered']
    %6 = vsyncpa [#allocation3], 0
    %7 = vsyncpa [#allocation4], 0
    // Predicated region
    $region2: #{tpu_custom_call.1} parent=1 // pred_check
      _
    $region3: #{tpu_custom_call.1} parent=1 // pred_check_branch
      %9 = sbr.rel (0) target = $region5
    $region4: #{tpu_custom_call.1} parent=1 // pred_region
      %s11 = ssub.s32 256, 256
      %12 = vsyncadd [#allocation3], %s11
      %s14 = sshll.u32 [#allocation2], 4
      %s15 = int_to_ptr.vmem [resolvable:$true] %s14
      %17 = dma.hbm_to_vmem [thread:$0]  %s0, 256, %s15, [#allocation3]
    $region5: #{tpu_custom_call.1} parent=1 // pred_fallthru
      _
    // Predicated region
    $region6: #{tpu_custom_call.1} parent=1 // pred_check
      _
    $region7: #{tpu_custom_call.1} parent=1 // pred_check_branch
      %19 = sbr.rel (0) target = $region9
    $region8: #{tpu_custom_call.1} parent=1 // pred_region
      %20 = dma.done [#allocation3], 256
    $region9: #{tpu_custom_call.1} parent=1 // pred_fallthru
      _
    %v21 = vld [vmem:[#allocation2] sm:$0xff]
    %v22 = vld [vmem:[#allocation2 + $0x8] sm:$0xff]
    %v23 = vadd.f32 %v21, 3.0
    %v24 = vadd.f32 %v22, 3.0
    %v25 = vmax.f32 %v23, 0.0
    %v26 = vmax.f32 %v24, 0.0
    %v27 = vmin.f32 %v25, 6.0
    %v28 = vmin.f32 %v26, 6.0
    %v29 = vmul.f32 %v27, 0.16666667
    %v30 = vmul.f32 %v28, 0.16666667
    %31 = vst [vmem:[#allocation5] sm:$0xff] %v29
    %32 = vst [vmem:[#allocation5 + $0x8] sm:$0xff] %v30
    // Predicated region
    $region10: #{tpu_custom_call.1} parent=1 // pred_check
      _
    $region11: #{tpu_custom_call.1} parent=1 // pred_check_branch
      %34 = sbr.rel (0) target = $region13
    $region12: #{tpu_custom_call.1} parent=1 // pred_region
      %s36 = ssub.s32 256, 256
      %37 = vsyncadd [#allocation4], %s36
      %s39 = sshll.u32 [#allocation5], 4
      %s40 = int_to_ptr.vmem [resolvable:$true] %s39
      %42 = dma.vmem_to_hbm [thread:$0]  %s40, 256, %s1, [#allocation4]
    $region13: #{tpu_custom_call.1} parent=1 // pred_fallthru
      _
    // Predicated region
    $region14: #{tpu_custom_call.1} parent=1 // pred_check
      _
    $region15: #{tpu_custom_call.1} parent=1 // pred_check_branch
      %44 = sbr.rel (0) target = $region17
    $region16: #{tpu_custom_call.1} parent=1 // pred_region
      %45 = dma.done [#allocation4], 256
    $region17: #{tpu_custom_call.1} parent=1 // pred_fallthru
      _
    %46 = vsyncpa [#allocation3], 1
    %47 = vsyncpa [#allocation4], 1

</llo_original>
